<compile_context>
chip_gen: v6e
topology: v6e:2x2x1
jax: 0.10.0
libtpu: 0.0.40
codegen_flags: <defaults>
</compile_context>

<pallas_src>
import functools

import jax
import jax.numpy as jnp
from jax.experimental import pallas as pl
from jax.experimental.pallas import tpu as pltpu

LN_EPS = 1e-5                    # torch nn.LayerNorm default eps
_MM_DTYPE = jnp.bfloat16         # MXU operand dtype (accumulation stays f32)
_PIX_TILE = 512                  # pixel (lane) tile target for all kernels


def _vmem_limit_bytes():
    """Generation-aware VMEM budget: ~3/4 of physical, capped at 100 MiB.

    v5e/v6e (128 MiB physical) -> 96 MiB, v7x (64 MiB physical) -> 48 MiB.
    """
    try:
        cap = pltpu.get_tpu_info().vmem_capacity_bytes
    except Exception:            # non-TPU tracing / older jax: conservative default
        cap = 64 * 1024 * 1024
    return int(min(cap * 3 // 4, 100 * 1024 * 1024))


def _pix_tile(n):
    # Full extent when small, else a fixed lane-aligned tile.  pl.cdiv plus
    # Pallas' masked ragged last block handles non-divisible sizes — no divisor
    # search collapsing to tiny tiles for awkward BEV sizes.
    return n if n <= _PIX_TILE else _PIX_TILE


# --------------------------------------------------------------- math helpers
def _ln_cm(x, g, b):
    """LayerNorm over the channel axis (-2) of a channel-major (..., C, L) tile.

    One-pass variance E[x^2] - mu^2; g/b are (C, 1) columns (lane broadcast).
    """
    mu = jnp.mean(x, axis=-2, keepdims=True)
    var = jnp.mean(x * x, axis=-2, keepdims=True) - mu * mu
    return (x - mu) * jax.lax.rsqrt(var + LN_EPS) * g + b


def _gelu_tanh(x):
    # tanh-form GELU: the transcendental goes to the (otherwise idle) EUP slot.
    # |err| vs the exact erf GELU is ~3e-3 absolute — far below test tolerance.
    c = 0.7978845608028654  # sqrt(2/pi)
    return 0.5 * x * (1.0 + jnp.tanh(c * (x + 0.044715 * x * x * x)))


def _mm2(w_bf16, x):
    """Channel-major linear: (Cin, Cout) x (Cin, L) -> (Cout, L).

    bf16 MXU operands, f32 accumulation via preferred_element_type.
    """
    return jax.lax.dot_general(
        w_bf16, x.astype(_MM_DTYPE), (((0,), (0,)), ((), ())),
        preferred_element_type=jnp.float32)


# ----------------------------- kernel 1: fused K + V LayerNorm + Linear (cm) --
def _kv_proj_kernel(k_ref, v_ref, kg, kb, kw, kbias, vg, vb, vw, vbias,
                    ko_ref, vo_ref):
    # k_ref / v_ref: (D, tk) channel-major image-feature tiles.
    ko_ref[...] = _mm2(kw[...], _ln_cm(k_ref[...], kg[...], kb[...])) + kbias[...]
    vo_ref[...] = _mm2(vw[...], _ln_cm(v_ref[...], vg[...], vb[...])) + vbias[...]


def kv_projection(k_cm, v_cm, pp):
    """(B*N, D, Kn) channel-major k/v -> projected (B*N, HD, Kn) pair (f32)."""
    BN, D, Kn = k_cm.shape
    HD = pp["k_w_mm"].shape[1]
    tk = _pix_tile(Kn)

    row_in = pl.BlockSpec((None, D, tk), lambda i, t: (i, 0, t))
    row_out = pl.BlockSpec((None, HD, tk), lambda i, t: (i, 0, t))

    def const(a):
        nd = a.ndim
        return pl.BlockSpec(a.shape, lambda i, t, _nd=nd: (0,) * _nd)

    consts = (pp["k_g"], pp["k_beta"], pp["k_w_mm"], pp["k_bias"],
              pp["v_g"], pp["v_beta"], pp["v_w_mm"], pp["v_bias"])
    # TODO(synk): single-buffer the constant weight blocks (pl.Buffered(1)) to
    # reclaim VMEM on v7x once verified on the target jax version.
    return pl.pallas_call(
        _kv_proj_kernel,
        out_shape=(jax.ShapeDtypeStruct((BN, HD, Kn), jnp.float32),
                   jax.ShapeDtypeStruct((BN, HD, Kn), jnp.float32)),
        grid=(BN, pl.cdiv(Kn, tk)),
        in_specs=[row_in, row_in] + [const(c) for c in consts],
        out_specs=(row_out, row_out),
        compiler_params=pltpu.CompilerParams(
            dimension_semantics=("parallel", "parallel"),
            vmem_limit_bytes=_vmem_limit_bytes()),
    )(k_cm, v_cm, *consts)


# ---- kernel 2: fused q-proj + multi-head cross-camera attention + out block --
def _attention_core(q_ref, k_ref, v_ref, qg, qb, qw, qbias, *,
                    n_cams, heads, dim_head):
    # q_ref: (N, D, tq)  raw BEV queries (channel-major)
    # k_ref, v_ref: (N, HD, Kn) projected keys / values, fully resident per batch
    tq = q_ref.shape[-1]
    kn = k_ref.shape[-1]
    nh = n_cams * heads

    # --- q LayerNorm + projection (softmax scale pre-folded into qw/qbias) ----
    xn = _ln_cm(q_ref[...], qg[...], qb[...]).astype(_MM_DTYPE)        # (N, D, tq)
    w = jnp.broadcast_to(qw[...], (n_cams,) + tuple(qw.shape))         # (N, D, HD)
    qp = jax.lax.dot_general(w, xn, (((1,), (1,)), ((0,), (0,))),
                             preferred_element_type=jnp.float32)       # (N, HD, tq)
    qp = qp + qbias[...]

    # --- batched scores over the (camera*head) batch axis ---------------------
    # dim_head is a multiple of the 8-row f32 sublane tile, so these head-split
    # reshapes are layout-preserving (free).
    q4 = qp.reshape(nh, dim_head, tq).astype(_MM_DTYPE)
    k4 = k_ref[...].reshape(nh, dim_head, kn).astype(_MM_DTYPE)
    v4 = v_ref[...].reshape(nh, dim_head, kn).astype(_MM_DTYPE)
    s = jax.lax.dot_general(k4, q4, (((1,), (1,)), ((0,), (0,))),
                            preferred_element_type=jnp.float32)        # (NH, Kn, tq)

    # --- one softmax over the joint (camera, key) axis per (head, query) ------
    s = s.reshape(n_cams, heads, kn, tq)
    m = jnp.max(jnp.max(s, axis=2, keepdims=True), axis=0, keepdims=True)
    p = jnp.exp(s - m)
    denom = jnp.sum(jnp.sum(p, axis=2, keepdims=True), axis=0, keepdims=True)

    # --- one batched P @ V and the normalization ------------------------------
    p4 = p.reshape(nh, kn, tq).astype(_MM_DTYPE)
    acc = jax.lax.dot_general(v4, p4, (((2,), (1,)), ((0,), (0,))),
                              preferred_element_type=jnp.float32)      # (NH, Dh, tq)
    acc = acc.reshape(n_cams, heads, dim_head, tq).sum(axis=0)         # (H, Dh, tq)
    inv = pl.reciprocal(denom, approx=True).reshape(heads, 1, tq)      # EUP recip
    return (acc * inv).reshape(heads * dim_head, tq)                   # (HD, tq)


def _out_tail(a, skip, pw, pb, g1, b1, w1, bb1, w2, bb2, g2, b2):
    # a: (HD, tq) attention output; proj (+skip) + prenorm + MLP(GELU) + postnorm.
    z = _mm2(pw[...], a) + pb[...]
    if skip is not None:
        z = z + skip
    z = _ln_cm(z, g1[...], b1[...])
    h = _gelu_tanh(_mm2(w1[...], z) + bb1[...])
    z = z + _mm2(w2[...], h) + bb2[...]
    return _ln_cm(z, g2[...], b2[...])


def _attn_out_skip_kernel(q_ref, k_ref, v_ref, skip_ref,
                          qg, qb, qw, qbias, pw, pb, g1, b1, w1, bb1,
                          w2, bb2, g2, b2, o_ref, *, n_cams, heads, dim_head):
    a = _attention_core(q_ref, k_ref, v_ref, qg, qb, qw, qbias,
                        n_cams=n_cams, heads=heads, dim_head=dim_head)
    o_ref[...] = _out_tail(a, skip_ref[...], pw, pb, g1, b1, w1, bb1,
                           w2, bb2, g2, b2)


def _attn_out_noskip_kernel(q_ref, k_ref, v_ref,
                            qg, qb, qw, qbias, pw, pb, g1, b1, w1, bb1,
                            w2, bb2, g2, b2, o_ref, *, n_cams, heads, dim_head):
    a = _attention_core(q_ref, k_ref, v_ref, qg, qb, qw, qbias,
                        n_cams=n_cams, heads=heads, dim_head=dim_head)
    o_ref[...] = _out_tail(a, None, pw, pb, g1, b1, w1, bb1, w2, bb2, g2, b2)


def attention_out_block(q_cm, kp, vp, skip_cm, pp, *, heads, dim_head):
    """Fused q-proj + attention + output block.

    q_cm: (B, N, D, Qn) raw queries (channel-major); kp/vp: (B, N, HD, Kn);
    skip_cm: (B, D, Qn) or None.  Returns (B, D, Qn) f32.
    """
    B, N, D, Qn = q_cm.shape
    HD, Kn = kp.shape[-2], kp.shape[-1]
    tq = _pix_tile(Qn)

    q_spec = pl.BlockSpec((None, N, D, tq), lambda b, t: (b, 0, 0, t))
    kv_spec = pl.BlockSpec((None, N, HD, Kn), lambda b, t: (b, 0, 0, 0))
    dq_spec = pl.BlockSpec((None, D, tq), lambda b, t: (b, 0, t))

    def const(a):
        nd = a.ndim
        return pl.BlockSpec(a.shape, lambda b, t, _nd=nd: (0,) * _nd)

    consts = (pp["q_g"], pp["q_beta"], pp["q_w_mm"], pp["q_bias_s"],
              pp["proj_w_mm"], pp["proj_b"], pp["pre_g"], pp["pre_b"],
              pp["mlp_w1_mm"], pp["mlp_b1"], pp["mlp_w2_mm"], pp["mlp_b2"],
              pp["post_g"], pp["post_b"])
    const_specs = [const(c) for c in consts]

    if skip_cm is not None:
        kernel = functools.partial(_attn_out_skip_kernel, n_cams=N,
                                   heads=heads, dim_head=dim_head)
        args = (q_cm, kp, vp, skip_cm) + consts
        in_specs = [q_spec, kv_spec, kv_spec, dq_spec] + const_specs
    else:
        kernel = functools.partial(_attn_out_noskip_kernel, n_cams=N,
                                   heads=heads, dim_head=dim_head)
        args = (q_cm, kp, vp) + consts
        in_specs = [q_spec, kv_spec, kv_spec] + const_specs

    # Q tiles are the inner grid axis so the resident (N, HD, Kn) K/V blocks are
    # re-fetched only when the batch index changes; both axes carry no state so
    # both are "parallel" (megacore may shard either).
    # TODO(synk): on v7x, if the resident K/V slabs approach the 64 MiB VMEM,
    # switch to a key-tile grid axis with an online-softmax accumulator.
    return pl.pallas_call(
        kernel,
        out_shape=jax.ShapeDtypeStruct((B, D, Qn), jnp.float32),
        grid=(B, pl.cdiv(Qn, tq)),
        in_specs=in_specs,
        out_specs=dq_spec,
        compiler_params=pltpu.CompilerParams(
            dimension_semantics=("parallel", "parallel"),
            vmem_limit_bytes=_vmem_limit_bytes()),
    )(*args)


# --------------------------------------------------------------- full forward
def cross_attention_forward(q, k, v, pp, skip=None, *, heads, dim_head):
    """CrossAttention forward.  `pp` = prepare_params(init_params(...), dim)."""
    B, N, D, bH, bW = q.shape
    iH, iW = k.shape[-2:]
    Qn, Kn = bH * bW, iH * iW
    HD = heads * dim_head

    # Channel-major slabs — pure reshapes, no HBM transposes anywhere.
    q_cm = q.reshape(B, N, D, Qn)
    k_cm = k.reshape(B * N, D, Kn)
    v_cm = v.reshape(B * N, D, Kn)
    skip_cm = None if skip is None else skip.reshape(B, D, Qn)

    # TODO(synk): store kp/vp in bf16 (halves K/V residency) once a
    # (16,128)-tile-friendly head-split layout is plumbed through; matmul
    # operands are already cast to bf16 in-kernel.
    kp, vp = kv_projection(k_cm, v_cm, pp)
    kp = kp.reshape(B, N, HD, Kn)
    vp = vp.reshape(B, N, HD, Kn)

    z = attention_out_block(q_cm, kp, vp, skip_cm, pp,
                            heads=heads, dim_head=dim_head)            # (B, D, Qn)
    return z.reshape(B, D, bH, bW)


# --------------------------------------------------------------------- params
def init_params(key, D, heads, dim_head):
    """Channel-major parameters: LN vectors and biases as (C, 1) columns,
    linear weights as (in, out) == torch weight.T; qkv_bias=True."""
    HD = heads * dim_head
    ks = jax.random.split(key, 22)

    def nrm(k, shape, s=0.05):
        return (s * jax.random.normal(k, shape)).astype(jnp.float32)

    return dict(
        q_g=1.0 + nrm(ks[0], (D, 1)), q_beta=nrm(ks[1], (D, 1)),
        q_w=nrm(ks[2], (D, HD), 0.2), q_bias=nrm(ks[3], (HD, 1)),
        k_g=1.0 + nrm(ks[4], (D, 1)), k_beta=nrm(ks[5], (D, 1)),
        k_w=nrm(ks[6], (D, HD), 0.2), k_bias=nrm(ks[7], (HD, 1)),
        v_g=1.0 + nrm(ks[8], (D, 1)), v_beta=nrm(ks[9], (D, 1)),
        v_w=nrm(ks[10], (D, HD), 0.2), v_bias=nrm(ks[11], (HD, 1)),
        proj_w=nrm(ks[12], (HD, D), 0.2), proj_b=nrm(ks[13], (D, 1)),
        pre_g=1.0 + nrm(ks[14], (D, 1)), pre_b=nrm(ks[15], (D, 1)),
        mlp_w1=nrm(ks[16], (D, 2 * D), 0.2), mlp_b1=nrm(ks[17], (2 * D, 1)),
        mlp_w2=nrm(ks[18], (2 * D, D), 0.2), mlp_b2=nrm(ks[19], (D, 1)),
        post_g=1.0 + nrm(ks[20], (D, 1)), post_b=nrm(ks[21], (D, 1)),
    )


def prepare_params(params, dim):
    """One-time parameter prep: fold the softmax scale (dim**-0.5, as in the
    PyTorch module — NOT dim_head**-0.5) into the q projection, and pre-cast
    all matmul weights to bf16 MXU-operand dtype."""
    scale = float(dim) ** -0.5
    pp = dict(params)
    pp["q_w_mm"] = (params["q_w"] * scale).astype(_MM_DTYPE)
    pp["q_bias_s"] = params["q_bias"] * scale
    for name in ("k_w", "v_w", "proj_w", "mlp_w1", "mlp_w2"):
        pp[name + "_mm"] = params[name].astype(_MM_DTYPE)
    return pp


# ---------------------------------------------------------- pure JAX reference
def reference_forward(q, k, v, params, skip, *, heads, dim_head):
    hp = jax.lax.Precision.HIGHEST
    B, N, D, bH, bW = q.shape
    iH, iW = k.shape[-2:]
    Qn, Kn = bH * bW, iH * iW
    scale = float(D) ** -0.5

    def vec(p):
        return p[:, 0]

    def ln(x, g, b):
        mu = x.mean(-1, keepdims=True)
        var = ((x - mu) ** 2).mean(-1, keepdims=True)
        return (x - mu) / jnp.sqrt(var + LN_EPS) * g + b

    q2 = q.reshape(B, N, D, Qn).transpose(0, 1, 3, 2)
    k2 = k.reshape(B, N, D, Kn).transpose(0, 1, 3, 2)
    v2 = v.transpose(0, 1, 3, 4, 2).reshape(B, N * Kn, D)

    qp = jnp.einsum("bnqd,de->bnqe", ln(q2, vec(params["q_g"]), vec(params["q_beta"])),
                    params["q_w"], precision=hp) + vec(params["q_bias"])
    kp = jnp.einsum("bnkd,de->bnke", ln(k2, vec(params["k_g"]), vec(params["k_beta"])),
                    params["k_w"], precision=hp) + vec(params["k_bias"])
    vp = jnp.einsum("bkd,de->bke", ln(v2, vec(params["v_g"]), vec(params["v_beta"])),
                    params["v_w"], precision=hp) + vec(params["v_bias"])

    qp = qp.reshape(B, N, Qn, heads, dim_head)
    kp = kp.reshape(B, N, Kn, heads, dim_head)
    vp = vp.reshape(B, N * Kn, heads, dim_head)

    prob = scale * jnp.einsum("bnqmd,bnkmd->bnqkm", qp, kp, precision=hp)
    prob = prob.transpose(0, 2, 1, 3, 4).reshape(B, Qn, N * Kn, heads)
    att = jax.nn.softmax(prob, axis=-2)
    a = jnp.einsum("bqkm,bkmd->bqmd", att, vp,
                   precision=hp).reshape(B, Qn, heads * dim_head)

    z = jnp.einsum("bqe,ed->bqd", a, params["proj_w"], precision=hp) + vec(params["proj_b"])
    if skip is not None:
        z = z + skip.reshape(B, D, Qn).transpose(0, 2, 1)
    z = ln(z, vec(params["pre_g"]), vec(params["pre_b"]))
    h = jnp.einsum("bqd,df->bqf", z, params["mlp_w1"], precision=hp) + vec(params["mlp_b1"])
    h = jax.nn.gelu(h, approximate=False)
    z = z + jnp.einsum("bqf,fd->bqd", h, params["mlp_w2"], precision=hp) + vec(params["mlp_b2"])
    z = ln(z, vec(params["post_g"]), vec(params["post_b"]))
    return z.reshape(B, bH, bW, D).transpose(0, 3, 1, 2)


# ----------------------------------------------------------------------- main
if __name__ == "__main__":
    B, N, D = 2, 2, 32
    heads, dim_head = 4, 8
    bev_H = bev_W = 4
    img_H = img_W = 4

    key = jax.random.PRNGKey(0)
    kq, kk, kv, ksk, kpar = jax.random.split(key, 5)
    q = jax.random.normal(kq, (B, N, D, bev_H, bev_W), jnp.float32)
    k = jax.random.normal(kk, (B, N, D, img_H, img_W), jnp.float32)
    v = jax.random.normal(kv, (B, N, D, img_H, img_W), jnp.float32)
    skip = jax.random.normal(ksk, (B, D, bev_H, bev_W), jnp.float32)
    params = init_params(kpar, D, heads, dim_head)
    pp = prepare_params(params, D)

    # bf16 MXU operands + tanh GELU + EUP approx reciprocal => slightly looser
    # tolerance than a pure-f32 pipeline would need.
    RTOL = ATOL = 5e-2

    # with skip
    out = cross_attention_forward(q, k, v, pp, skip, heads=heads, dim_head=dim_head)
    out = jax.block_until_ready(out)
    ref = reference_forward(q, k, v, params, skip, heads=heads, dim_head=dim_head)
    assert out.shape == (B, D, bev_H, bev_W), out.shape
    assert jnp.allclose(out, ref, rtol=RTOL, atol=ATOL), float(jnp.max(jnp.abs(out - ref)))

    # without skip (exercises the no-skip kernel variant)
    out0 = cross_attention_forward(q, k, v, pp, None, heads=heads, dim_head=dim_head)
    out0 = jax.block_until_ready(out0)
    ref0 = reference_forward(q, k, v, params, None, heads=heads, dim_head=dim_head)
    assert jnp.allclose(out0, ref0, rtol=RTOL, atol=ATOL), float(jnp.max(jnp.abs(out0 - ref0)))

    print("KERNEL_OK")
</pallas_src>

<mosaic_0001>
module attributes {stable_mosaic.version = 11 : i64} {
  func.func @_kv_proj_kernel(%arg0: i32, %arg1: i32, %arg2: memref<1x32x16xf32, #tpu.memory_space<vmem>>, %arg3: memref<1x32x16xf32, #tpu.memory_space<vmem>>, %arg4: memref<32x1xf32, #tpu.memory_space<vmem>>, %arg5: memref<32x1xf32, #tpu.memory_space<vmem>>, %arg6: memref<32x32xbf16, #tpu.memory_space<vmem>>, %arg7: memref<32x1xf32, #tpu.memory_space<vmem>>, %arg8: memref<32x1xf32, #tpu.memory_space<vmem>>, %arg9: memref<32x1xf32, #tpu.memory_space<vmem>>, %arg10: memref<32x32xbf16, #tpu.memory_space<vmem>>, %arg11: memref<32x1xf32, #tpu.memory_space<vmem>>, %arg12: memref<1x32x16xf32, #tpu.memory_space<vmem>>, %arg13: memref<1x32x16xf32, #tpu.memory_space<vmem>>) attributes {dimension_semantics = [#tpu.dimension_semantics<parallel>, #tpu.dimension_semantics<parallel>], iteration_bounds = array<i64: 4, 1>, scalar_prefetch = 0 : i64, scratch_operands = 0 : i64, tpu.core_type = #tpu.core_type<tc>, window_params = [{transform_indices = @transform_0, window_bounds = array<i64: 1, 32, 16>}, {transform_indices = @transform_1, window_bounds = array<i64: 1, 32, 16>}, {pipeline_mode = #tpu.pipeline_mode<synchronous>, transform_indices = @transform_2, window_bounds = array<i64: 32, 1>}, {pipeline_mode = #tpu.pipeline_mode<synchronous>, transform_indices = @transform_3, window_bounds = array<i64: 32, 1>}, {pipeline_mode = #tpu.pipeline_mode<synchronous>, transform_indices = @transform_4, window_bounds = array<i64: 32, 32>}, {pipeline_mode = #tpu.pipeline_mode<synchronous>, transform_indices = @transform_5, window_bounds = array<i64: 32, 1>}, {pipeline_mode = #tpu.pipeline_mode<synchronous>, transform_indices = @transform_6, window_bounds = array<i64: 32, 1>}, {pipeline_mode = #tpu.pipeline_mode<synchronous>, transform_indices = @transform_7, window_bounds = array<i64: 32, 1>}, {pipeline_mode = #tpu.pipeline_mode<synchronous>, transform_indices = @transform_8, window_bounds = array<i64: 32, 32>}, {pipeline_mode = #tpu.pipeline_mode<synchronous>, transform_indices = @transform_9, window_bounds = array<i64: 32, 1>}, {transform_indices = @transform_10, window_bounds = array<i64: 1, 32, 16>}, {transform_indices = @transform_11, window_bounds = array<i64: 1, 32, 16>}]} {
    %c0 = arith.constant 0 : index
    %c0_0 = arith.constant 0 : index
    %0 = vector.load %arg6[%c0, %c0_0] : memref<32x32xbf16, #tpu.memory_space<vmem>>, vector<32x32xbf16>
    %c0_1 = arith.constant 0 : index
    %c0_2 = arith.constant 0 : index
    %c0_3 = arith.constant 0 : index
    %1 = vector.load %arg2[%c0_1, %c0_2, %c0_3] : memref<1x32x16xf32, #tpu.memory_space<vmem>>, vector<1x32x16xf32>
    %2 = vector.shape_cast %1 : vector<1x32x16xf32> to vector<32x16xf32>
    %c0_4 = arith.constant 0 : index
    %c0_5 = arith.constant 0 : index
    %3 = vector.load %arg4[%c0_4, %c0_5] : memref<32x1xf32, #tpu.memory_space<vmem>>, vector<32x1xf32>
    %c0_6 = arith.constant 0 : index
    %c0_7 = arith.constant 0 : index
    %4 = vector.load %arg5[%c0_6, %c0_7] : memref<32x1xf32, #tpu.memory_space<vmem>>, vector<32x1xf32>
    %cst = arith.constant dense<0.000000e+00> : vector<16xf32>
    %5 = vector.multi_reduction <add>, %2, %cst [0] : vector<32x16xf32> to vector<16xf32>
    %6 = vector.shape_cast %5 : vector<16xf32> to vector<1x16xf32>
    %cst_8 = arith.constant 3.200000e+01 : f32
    %7 = vector.broadcast %cst_8 : f32 to vector<1x16xf32>
    %8 = arith.divf %6, %7 : vector<1x16xf32>
    %9 = arith.mulf %2, %2 : vector<32x16xf32>
    %cst_9 = arith.constant dense<0.000000e+00> : vector<16xf32>
    %10 = vector.multi_reduction <add>, %9, %cst_9 [0] : vector<32x16xf32> to vector<16xf32>
    %11 = vector.shape_cast %10 : vector<16xf32> to vector<1x16xf32>
    %cst_10 = arith.constant 3.200000e+01 : f32
    %12 = vector.broadcast %cst_10 : f32 to vector<1x16xf32>
    %13 = arith.divf %11, %12 : vector<1x16xf32>
    %14 = arith.mulf %8, %8 : vector<1x16xf32>
    %15 = arith.subf %13, %14 : vector<1x16xf32>
    %16 = vector.broadcast %8 : vector<1x16xf32> to vector<32x16xf32>
    %17 = arith.subf %2, %16 : vector<32x16xf32>
    %cst_11 = arith.constant 9.99999974E-6 : f32
    %18 = vector.broadcast %cst_11 : f32 to vector<1x16xf32>
    %19 = arith.addf %15, %18 : vector<1x16xf32>
    %20 = math.rsqrt %19 : vector<1x16xf32>
    %21 = vector.broadcast %20 : vector<1x16xf32> to vector<32x16xf32>
    %22 = arith.mulf %17, %21 : vector<32x16xf32>
    %23 = vector.broadcast %3 : vector<32x1xf32> to vector<32x16xf32>
    %24 = arith.mulf %22, %23 : vector<32x16xf32>
    %25 = vector.broadcast %4 : vector<32x1xf32> to vector<32x16xf32>
    %26 = arith.addf %24, %25 : vector<32x16xf32>
    %27 = arith.truncf %26 : vector<32x16xf32> to vector<32x16xbf16>
    %cst_12 = arith.constant dense<0.000000e+00> : vector<32x16xf32>
    %28 = tpu.matmul %0, %27, %cst_12 {dimension_numbers = #tpu.dot_dimension_numbers<[0], [0], [1], [1], [0, 1, 1, 1], [], []>} : vector<32x32xbf16>, vector<32x16xbf16>, vector<32x16xf32> -> vector<32x16xf32>
    %c0_13 = arith.constant 0 : index
    %c0_14 = arith.constant 0 : index
    %29 = vector.load %arg7[%c0_13, %c0_14] : memref<32x1xf32, #tpu.memory_space<vmem>>, vector<32x1xf32>
    %30 = vector.broadcast %29 : vector<32x1xf32> to vector<32x16xf32>
    %31 = arith.addf %28, %30 : vector<32x16xf32>
    %c0_15 = arith.constant 0 : index
    %c0_16 = arith.constant 0 : index
    %c0_17 = arith.constant 0 : index
    %32 = vector.load %arg12[%c0_15, %c0_16, %c0_17] : memref<1x32x16xf32, #tpu.memory_space<vmem>>, vector<1x32x16xf32>
    %33 = vector.shape_cast %32 : vector<1x32x16xf32> to vector<32x16xf32>
    %34 = vector.shape_cast %31 : vector<32x16xf32> to vector<1x32x16xf32>
    tpu.vector_store %arg12[%c0_15, %c0_16, %c0_17], %34 {strides = array<i32>} : memref<1x32x16xf32, #tpu.memory_space<vmem>>, vector<1x32x16xf32>,
    %c0_18 = arith.constant 0 : index
    %c0_19 = arith.constant 0 : index
    %35 = vector.load %arg10[%c0_18, %c0_19] : memref<32x32xbf16, #tpu.memory_space<vmem>>, vector<32x32xbf16>
    %c0_20 = arith.constant 0 : index
    %c0_21 = arith.constant 0 : index
    %c0_22 = arith.constant 0 : index
    %36 = vector.load %arg3[%c0_20, %c0_21, %c0_22] : memref<1x32x16xf32, #tpu.memory_space<vmem>>, vector<1x32x16xf32>
    %37 = vector.shape_cast %36 : vector<1x32x16xf32> to vector<32x16xf32>
    %c0_23 = arith.constant 0 : index
    %c0_24 = arith.constant 0 : index
    %38 = vector.load %arg8[%c0_23, %c0_24] : memref<32x1xf32, #tpu.memory_space<vmem>>, vector<32x1xf32>
    %c0_25 = arith.constant 0 : index
    %c0_26 = arith.constant 0 : index
    %39 = vector.load %arg9[%c0_25, %c0_26] : memref<32x1xf32, #tpu.memory_space<vmem>>, vector<32x1xf32>
    %cst_27 = arith.constant dense<0.000000e+00> : vector<16xf32>
    %40 = vector.multi_reduction <add>, %37, %cst_27 [0] : vector<32x16xf32> to vector<16xf32>
    %41 = vector.shape_cast %40 : vector<16xf32> to vector<1x16xf32>
    %cst_28 = arith.constant 3.200000e+01 : f32
    %42 = vector.broadcast %cst_28 : f32 to vector<1x16xf32>
    %43 = arith.divf %41, %42 : vector<1x16xf32>
    %44 = arith.mulf %37, %37 : vector<32x16xf32>
    %cst_29 = arith.constant dense<0.000000e+00> : vector<16xf32>
    %45 = vector.multi_reduction <add>, %44, %cst_29 [0] : vector<32x16xf32> to vector<16xf32>
    %46 = vector.shape_cast %45 : vector<16xf32> to vector<1x16xf32>
    %cst_30 = arith.constant 3.200000e+01 : f32
    %47 = vector.broadcast %cst_30 : f32 to vector<1x16xf32>
    %48 = arith.divf %46, %47 : vector<1x16xf32>
    %49 = arith.mulf %43, %43 : vector<1x16xf32>
    %50 = arith.subf %48, %49 : vector<1x16xf32>
    %51 = vector.broadcast %43 : vector<1x16xf32> to vector<32x16xf32>
    %52 = arith.subf %37, %51 : vector<32x16xf32>
    %cst_31 = arith.constant 9.99999974E-6 : f32
    %53 = vector.broadcast %cst_31 : f32 to vector<1x16xf32>
    %54 = arith.addf %50, %53 : vector<1x16xf32>
    %55 = math.rsqrt %54 : vector<1x16xf32>
    %56 = vector.broadcast %55 : vector<1x16xf32> to vector<32x16xf32>
    %57 = arith.mulf %52, %56 : vector<32x16xf32>
    %58 = vector.broadcast %38 : vector<32x1xf32> to vector<32x16xf32>
    %59 = arith.mulf %57, %58 : vector<32x16xf32>
    %60 = vector.broadcast %39 : vector<32x1xf32> to vector<32x16xf32>
    %61 = arith.addf %59, %60 : vector<32x16xf32>
    %62 = arith.truncf %61 : vector<32x16xf32> to vector<32x16xbf16>
    %cst_32 = arith.constant dense<0.000000e+00> : vector<32x16xf32>
    %63 = tpu.matmul %35, %62, %cst_32 {dimension_numbers = #tpu.dot_dimension_numbers<[0], [0], [1], [1], [0, 1, 1, 1], [], []>} : vector<32x32xbf16>, vector<32x16xbf16>, vector<32x16xf32> -> vector<32x16xf32>
    %c0_33 = arith.constant 0 : index
    %c0_34 = arith.constant 0 : index
    %64 = vector.load %arg11[%c0_33, %c0_34] : memref<32x1xf32, #tpu.memory_space<vmem>>, vector<32x1xf32>
    %65 = vector.broadcast %64 : vector<32x1xf32> to vector<32x16xf32>
    %66 = arith.addf %63, %65 : vector<32x16xf32>
    %c0_35 = arith.constant 0 : index
    %c0_36 = arith.constant 0 : index
    %c0_37 = arith.constant 0 : index
    %67 = vector.load %arg13[%c0_35, %c0_36, %c0_37] : memref<1x32x16xf32, #tpu.memory_space<vmem>>, vector<1x32x16xf32>
    %68 = vector.shape_cast %67 : vector<1x32x16xf32> to vector<32x16xf32>
    %69 = vector.shape_cast %66 : vector<32x16xf32> to vector<1x32x16xf32>
    tpu.vector_store %arg13[%c0_35, %c0_36, %c0_37], %69 {strides = array<i32>} : memref<1x32x16xf32, #tpu.memory_space<vmem>>, vector<1x32x16xf32>,
    return
  }
  func.func @transform_0(%arg0: i32, %arg1: i32) -> (i32, i32, i32) {
    %c0_i32 = arith.constant 0 : i32
    %c0_i32_0 = arith.constant 0 : i32
    return %arg0, %c0_i32, %arg1 : i32, i32, i32
  }
  func.func @transform_1(%arg0: i32, %arg1: i32) -> (i32, i32, i32) {
    %c0_i32 = arith.constant 0 : i32
    %c0_i32_0 = arith.constant 0 : i32
    return %arg0, %c0_i32, %arg1 : i32, i32, i32
  }
  func.func @transform_2(%arg0: i32, %arg1: i32) -> (i32, i32) {
    %c0_i32 = arith.constant 0 : i32
    %c0_i32_0 = arith.constant 0 : i32
    %c0_i32_1 = arith.constant 0 : i32
    return %c0_i32, %c0_i32_0 : i32, i32
  }
  func.func @transform_3(%arg0: i32, %arg1: i32) -> (i32, i32) {
    %c0_i32 = arith.constant 0 : i32
    %c0_i32_0 = arith.constant 0 : i32
    %c0_i32_1 = arith.constant 0 : i32
    return %c0_i32, %c0_i32_0 : i32, i32
  }
  func.func @transform_4(%arg0: i32, %arg1: i32) -> (i32, i32) {
    %c0_i32 = arith.constant 0 : i32
    %c0_i32_0 = arith.constant 0 : i32
    %c0_i32_1 = arith.constant 0 : i32
    return %c0_i32, %c0_i32_0 : i32, i32
  }
  func.func @transform_5(%arg0: i32, %arg1: i32) -> (i32, i32) {
    %c0_i32 = arith.constant 0 : i32
    %c0_i32_0 = arith.constant 0 : i32
    %c0_i32_1 = arith.constant 0 : i32
    return %c0_i32, %c0_i32_0 : i32, i32
  }
  func.func @transform_6(%arg0: i32, %arg1: i32) -> (i32, i32) {
    %c0_i32 = arith.constant 0 : i32
    %c0_i32_0 = arith.constant 0 : i32
    %c0_i32_1 = arith.constant 0 : i32
    return %c0_i32, %c0_i32_0 : i32, i32
  }
  func.func @transform_7(%arg0: i32, %arg1: i32) -> (i32, i32) {
    %c0_i32 = arith.constant 0 : i32
    %c0_i32_0 = arith.constant 0 : i32
    %c0_i32_1 = arith.constant 0 : i32
    return %c0_i32, %c0_i32_0 : i32, i32
  }
  func.func @transform_8(%arg0: i32, %arg1: i32) -> (i32, i32) {
    %c0_i32 = arith.constant 0 : i32
    %c0_i32_0 = arith.constant 0 : i32
    %c0_i32_1 = arith.constant 0 : i32
    return %c0_i32, %c0_i32_0 : i32, i32
  }
  func.func @transform_9(%arg0: i32, %arg1: i32) -> (i32, i32) {
    %c0_i32 = arith.constant 0 : i32
    %c0_i32_0 = arith.constant 0 : i32
    %c0_i32_1 = arith.constant 0 : i32
    return %c0_i32, %c0_i32_0 : i32, i32
  }
  func.func @transform_10(%arg0: i32, %arg1: i32) -> (i32, i32, i32) {
    %c0_i32 = arith.constant 0 : i32
    %c0_i32_0 = arith.constant 0 : i32
    return %arg0, %c0_i32, %arg1 : i32, i32, i32
  }
  func.func @transform_11(%arg0: i32, %arg1: i32) -> (i32, i32, i32) {
    %c0_i32 = arith.constant 0 : i32
    %c0_i32_0 = arith.constant 0 : i32
    return %arg0, %c0_i32, %arg1 : i32, i32, i32
  }
}

</mosaic_0001>

<llo_original>
// kernel: tpu_custom_call.1
$region0: #{tpu_custom_call.1}
  #allocation0 [shape = 'u32[]', space=smem, size = 0x4, offset = 0x4, fixed_abs, tag = 'smem constant byte address 0x4 - core index']
  #allocation1 [shape = 'u32[144,128]{1,0:T(1,128)}', space=vmem, size = 0x12000, scoped, tag = 'internal scratch']
  %s0 = inlined_call_operand.vmem [shape: f32[4,32,16], index: 0, kind: input, shape index: {}]
  %s1 = inlined_call_operand.vmem [shape: f32[4,32,16], index: 1, kind: input, shape index: {}]
  %s2 = inlined_call_operand.vmem [shape: f32[32,1], index: 2, kind: input, shape index: {}]
  %s3 = inlined_call_operand.vmem [shape: f32[32,1], index: 3, kind: input, shape index: {}]
  %s4 = inlined_call_operand.vmem [shape: bf16[32,32], index: 4, kind: input, shape index: {}]
  %s5 = inlined_call_operand.vmem [shape: f32[32,1], index: 5, kind: input, shape index: {}]
  %s6 = inlined_call_operand.vmem [shape: f32[32,1], index: 6, kind: input, shape index: {}]
  %s7 = inlined_call_operand.vmem [shape: f32[32,1], index: 7, kind: input, shape index: {}]
  %s8 = inlined_call_operand.vmem [shape: bf16[32,32], index: 8, kind: input, shape index: {}]
  %s9 = inlined_call_operand.vmem [shape: f32[32,1], index: 9, kind: input, shape index: {}]
  %s10 = inlined_call_operand.vmem [shape: f32[4,32,16], index: 10, kind: output, shape index: {0}]
  %s11 = inlined_call_operand.vmem [shape: f32[4,32,16], index: 11, kind: output, shape index: {1}]
  %12 = xla_tuple %s10, %s11
  %s13 = sld [smem:[#allocation0]]
  $region81: #{tpu_custom_call.1} parent=0
    _
  %s15 = ssub.s32 1, %s13
  %s16 = scalar_select 0, %s15, %s13
  loop: start=0, step=1, limit=6
  $region2: #{tpu_custom_call.1} parent=0 // loop_pre_header
    _
  $region3: #{tpu_custom_call.1} parent=0 // loop_header
    %s18 = sphi 0, %s22
    %p19 = scmp.ge.s32.totalorder %s18, 6
    %s25 = sphi 0, %s37
    %s26 = sphi 0, %s33
    %s27 = sphi 0, %s25
    %s28 = sphi 0, %s26
    %s29 = sphi 0, %s27
    %s30 = sphi 0, %s28
    %s42 = sphi 0, %s44
    %s45 = sphi 0, %s42
    %s46 = sphi 0, %s45
    %s62 = sphi 0, %s46
    %s70 = sphi 0, %s72
    %s73 = sphi 0, %s70
    %s74 = sphi 0, %s73
    %s90 = sphi 0, %s74
    %s94 = sphi 0, %s94
    %s96 = sphi 0, %s94
    %s97 = sphi 0, %s96
    %s111 = sphi 0, %s97
    %s115 = sphi 0, %s115
    %s117 = sphi 0, %s115
    %s118 = sphi 0, %s117
    %s132 = sphi 0, %s118
    %s136 = sphi 0, %s136
    %s138 = sphi 0, %s136
    %s139 = sphi 0, %s138
    %s153 = sphi 0, %s139
    %s157 = sphi 0, %s157
    %s159 = sphi 0, %s157
    %s160 = sphi 0, %s159
    %s174 = sphi 0, %s160
    %s178 = sphi 0, %s178
    %s180 = sphi 0, %s178
    %s181 = sphi 0, %s180
    %s195 = sphi 0, %s181
    %s199 = sphi 0, %s199
    %s201 = sphi 0, %s199
    %s202 = sphi 0, %s201
    %s216 = sphi 0, %s202
    %s220 = sphi 0, %s220
    %s222 = sphi 0, %s220
    %s223 = sphi 0, %s222
    %s237 = sphi 0, %s223
    %s241 = sphi 0, %s241
    %s243 = sphi 0, %s241
    %s244 = sphi 0, %s243
    %s258 = sphi 0, %s244
    %s266 = sphi 0, %s268
    %s269 = sphi 0, %s266
    %s270 = sphi 0, %s269
    %s286 = sphi 0, %s270
    %s294 = sphi 0, %s296
    %s297 = sphi 0, %s294
    %s298 = sphi 0, %s297
    %s314 = sphi 0, %s298
  $region4: #{tpu_custom_call.1} parent=0 // loop_header_branch
    %21 = sbr.rel (%p19) target = $region8
  $region5: #{tpu_custom_call.1} parent=0 // loop_body
    %s23 = ssub.s32 %s18, 1
    %s24 = ssub.s32 %s18, 2
    %s31 = sadd.s32 1, %s26
    %p32 = scmp.ge.s32.totalorder %s31, 1
    %s33 = scalar_select %p32, 0, %s31
    %s34 = sadd.s32 1, %s25
    %s35 = scalar_select %p32, %s34, %s25
    %p36 = scmp.ge.s32.totalorder %s35, 4
    %s37 = scalar_select %p36, 0, %s35
    %s38 = ssub.s32 %s25, %s37
    %s39 = ssub.s32 %s26, %s33
    %s40 = sor.u32 %s38, %s39
    %p41 = scmp.eq.s32.totalorder %s40, 0
    %s43 = sadd.s32 %s42, 1
    %s44 = scalar_select %p41, %s42, %s43
    %p47 = pneg %p41
    %p48 = scmp.eq.s32.totalorder %s18, 3
    %p49 = por %p47, %p48
    %p50 = scmp.ne.s32.totalorder %s42, %s45
    %p51 = scmp.eq.s32.totalorder %s18, 0
    %p52 = por %p50, %p51
    %p53 = scmp.ne.s32.totalorder %s42, %s45
    %p54 = scmp.eq.s32.totalorder %s23, 3
    %p55 = por %p53, %p54
    %p56 = scmp.ne.s32.totalorder %s45, %s46
    %p57 = scmp.eq.s32.totalorder %s23, 0
    %p58 = por %p56, %p57
    %p59 = scmp.ne.s32.totalorder %s45, %s46
    %p60 = scmp.eq.s32.totalorder %s24, 3
    %p61 = por %p59, %p60
    %p63 = scmp.ne.s32.totalorder %s46, %s62
    %p64 = scmp.eq.s32.totalorder %s24, 0
    %p65 = por %p63, %p64
    %s66 = ssub.s32 %s25, %s37
    %s67 = ssub.s32 %s26, %s33
    %s68 = sor.u32 %s66, %s67
    %p69 = scmp.eq.s32.totalorder %s68, 0
    %s71 = sadd.s32 %s70, 1
    %s72 = scalar_select %p69, %s70, %s71
    %p75 = pneg %p69
    %p76 = scmp.eq.s32.totalorder %s18, 3
    %p77 = por %p75, %p76
    %p78 = scmp.ne.s32.totalorder %s70, %s73
    %p79 = scmp.eq.s32.totalorder %s18, 0
    %p80 = por %p78, %p79
    %p81 = scmp.ne.s32.totalorder %s70, %s73
    %p82 = scmp.eq.s32.totalorder %s23, 3
    %p83 = por %p81, %p82
    %p84 = scmp.ne.s32.totalorder %s73, %s74
    %p85 = scmp.eq.s32.totalorder %s23, 0
    %p86 = por %p84, %p85
    %p87 = scmp.ne.s32.totalorder %s73, %s74
    %p88 = scmp.eq.s32.totalorder %s24, 3
    %p89 = por %p87, %p88
    %p91 = scmp.ne.s32.totalorder %s74, %s90
    %p92 = scmp.eq.s32.totalorder %s24, 0
    %p93 = por %p91, %p92
    %s95 = sadd.s32 %s94, 1
    %p98 = scmp.eq.s32.totalorder %s18, 3
    %p99 = scmp.ne.s32.totalorder %s94, %s96
    %p100 = scmp.eq.s32.totalorder %s18, 0
    %p101 = por %p99, %p100
    %p102 = scmp.ne.s32.totalorder %s94, %s96
    %p103 = scmp.eq.s32.totalorder %s23, 3
    %p104 = por %p102, %p103
    %p105 = scmp.ne.s32.totalorder %s96, %s97
    %p106 = scmp.eq.s32.totalorder %s23, 0
    %p107 = por %p105, %p106
    %p108 = scmp.ne.s32.totalorder %s96, %s97
    %p109 = scmp.eq.s32.totalorder %s24, 3
    %p110 = por %p108, %p109
    %p112 = scmp.ne.s32.totalorder %s97, %s111
    %p113 = scmp.eq.s32.totalorder %s24, 0
    %p114 = por %p112, %p113
    %s116 = sadd.s32 %s115, 1
    %p119 = scmp.eq.s32.totalorder %s18, 3
    %p120 = scmp.ne.s32.totalorder %s115, %s117
    %p121 = scmp.eq.s32.totalorder %s18, 0
    %p122 = por %p120, %p121
    %p123 = scmp.ne.s32.totalorder %s115, %s117
    %p124 = scmp.eq.s32.totalorder %s23, 3
    %p125 = por %p123, %p124
    %p126 = scmp.ne.s32.totalorder %s117, %s118
    %p127 = scmp.eq.s32.totalorder %s23, 0
    %p128 = por %p126, %p127
    %p129 = scmp.ne.s32.totalorder %s117, %s118
    %p130 = scmp.eq.s32.totalorder %s24, 3
    %p131 = por %p129, %p130
    %p133 = scmp.ne.s32.totalorder %s118, %s132
    %p134 = scmp.eq.s32.totalorder %s24, 0
    %p135 = por %p133, %p134
    %s137 = sadd.s32 %s136, 1
    %p140 = scmp.eq.s32.totalorder %s18, 3
    %p141 = scmp.ne.s32.totalorder %s136, %s138
    %p142 = scmp.eq.s32.totalorder %s18, 0
    %p143 = por %p141, %p142
    %p144 = scmp.ne.s32.totalorder %s136, %s138
    %p145 = scmp.eq.s32.totalorder %s23, 3
    %p146 = por %p144, %p145
    %p147 = scmp.ne.s32.totalorder %s138, %s139
    %p148 = scmp.eq.s32.totalorder %s23, 0
    %p149 = por %p147, %p148
    %p150 = scmp.ne.s32.totalorder %s138, %s139
    %p151 = scmp.eq.s32.totalorder %s24, 3
    %p152 = por %p150, %p151
    %p154 = scmp.ne.s32.totalorder %s139, %s153
    %p155 = scmp.eq.s32.totalorder %s24, 0
    %p156 = por %p154, %p155
    %s158 = sadd.s32 %s157, 1
    %p161 = scmp.eq.s32.totalorder %s18, 3
    %p162 = scmp.ne.s32.totalorder %s157, %s159
    %p163 = scmp.eq.s32.totalorder %s18, 0
    %p164 = por %p162, %p163
    %p165 = scmp.ne.s32.totalorder %s157, %s159
    %p166 = scmp.eq.s32.totalorder %s23, 3
    %p167 = por %p165, %p166
    %p168 = scmp.ne.s32.totalorder %s159, %s160
    %p169 = scmp.eq.s32.totalorder %s23, 0
    %p170 = por %p168, %p169
    %p171 = scmp.ne.s32.totalorder %s159, %s160
    %p172 = scmp.eq.s32.totalorder %s24, 3
    %p173 = por %p171, %p172
    %p175 = scmp.ne.s32.totalorder %s160, %s174
    %p176 = scmp.eq.s32.totalorder %s24, 0
    %p177 = por %p175, %p176
    %s179 = sadd.s32 %s178, 1
    %p182 = scmp.eq.s32.totalorder %s18, 3
    %p183 = scmp.ne.s32.totalorder %s178, %s180
    %p184 = scmp.eq.s32.totalorder %s18, 0
    %p185 = por %p183, %p184
    %p186 = scmp.ne.s32.totalorder %s178, %s180
    %p187 = scmp.eq.s32.totalorder %s23, 3
    %p188 = por %p186, %p187
    %p189 = scmp.ne.s32.totalorder %s180, %s181
    %p190 = scmp.eq.s32.totalorder %s23, 0
    %p191 = por %p189, %p190
    %p192 = scmp.ne.s32.totalorder %s180, %s181
    %p193 = scmp.eq.s32.totalorder %s24, 3
    %p194 = por %p192, %p193
    %p196 = scmp.ne.s32.totalorder %s181, %s195
    %p197 = scmp.eq.s32.totalorder %s24, 0
    %p198 = por %p196, %p197
    %s200 = sadd.s32 %s199, 1
    %p203 = scmp.eq.s32.totalorder %s18, 3
    %p204 = scmp.ne.s32.totalorder %s199, %s201
    %p205 = scmp.eq.s32.totalorder %s18, 0
    %p206 = por %p204, %p205
    %p207 = scmp.ne.s32.totalorder %s199, %s201
    %p208 = scmp.eq.s32.totalorder %s23, 3
    %p209 = por %p207, %p208
    %p210 = scmp.ne.s32.totalorder %s201, %s202
    %p211 = scmp.eq.s32.totalorder %s23, 0
    %p212 = por %p210, %p211
    %p213 = scmp.ne.s32.totalorder %s201, %s202
    %p214 = scmp.eq.s32.totalorder %s24, 3
    %p215 = por %p213, %p214
    %p217 = scmp.ne.s32.totalorder %s202, %s216
    %p218 = scmp.eq.s32.totalorder %s24, 0
    %p219 = por %p217, %p218
    %s221 = sadd.s32 %s220, 1
    %p224 = scmp.eq.s32.totalorder %s18, 3
    %p225 = scmp.ne.s32.totalorder %s220, %s222
    %p226 = scmp.eq.s32.totalorder %s18, 0
    %p227 = por %p225, %p226
    %p228 = scmp.ne.s32.totalorder %s220, %s222
    %p229 = scmp.eq.s32.totalorder %s23, 3
    %p230 = por %p228, %p229
    %p231 = scmp.ne.s32.totalorder %s222, %s223
    %p232 = scmp.eq.s32.totalorder %s23, 0
    %p233 = por %p231, %p232
    %p234 = scmp.ne.s32.totalorder %s222, %s223
    %p235 = scmp.eq.s32.totalorder %s24, 3
    %p236 = por %p234, %p235
    %p238 = scmp.ne.s32.totalorder %s223, %s237
    %p239 = scmp.eq.s32.totalorder %s24, 0
    %p240 = por %p238, %p239
    %s242 = sadd.s32 %s241, 1
    %p245 = scmp.eq.s32.totalorder %s18, 3
    %p246 = scmp.ne.s32.totalorder %s241, %s243
    %p247 = scmp.eq.s32.totalorder %s18, 0
    %p248 = por %p246, %p247
    %p249 = scmp.ne.s32.totalorder %s241, %s243
    %p250 = scmp.eq.s32.totalorder %s23, 3
    %p251 = por %p249, %p250
    %p252 = scmp.ne.s32.totalorder %s243, %s244
    %p253 = scmp.eq.s32.totalorder %s23, 0
    %p254 = por %p252, %p253
    %p255 = scmp.ne.s32.totalorder %s243, %s244
    %p256 = scmp.eq.s32.totalorder %s24, 3
    %p257 = por %p255, %p256
    %p259 = scmp.ne.s32.totalorder %s244, %s258
    %p260 = scmp.eq.s32.totalorder %s24, 0
    %p261 = por %p259, %p260
    %s262 = ssub.s32 %s25, %s37
    %s263 = ssub.s32 %s26, %s33
    %s264 = sor.u32 %s262, %s263
    %p265 = scmp.eq.s32.totalorder %s264, 0
    %s267 = sadd.s32 %s266, 1
    %s268 = scalar_select %p265, %s266, %s267
    %p271 = pneg %p265
    %p272 = scmp.eq.s32.totalorder %s18, 3
    %p273 = por %p271, %p272
    %p274 = scmp.ne.s32.totalorder %s266, %s269
    %p275 = scmp.eq.s32.totalorder %s18, 0
    %p276 = por %p274, %p275
    %p277 = scmp.ne.s32.totalorder %s266, %s269
    %p278 = scmp.eq.s32.totalorder %s23, 3
    %p279 = por %p277, %p278
    %p280 = scmp.ne.s32.totalorder %s269, %s270
    %p281 = scmp.eq.s32.totalorder %s23, 0
    %p282 = por %p280, %p281
    %p283 = scmp.ne.s32.totalorder %s269, %s270
    %p284 = scmp.eq.s32.totalorder %s24, 3
    %p285 = por %p283, %p284
    %p287 = scmp.ne.s32.totalorder %s270, %s286
    %p288 = scmp.eq.s32.totalorder %s24, 0
    %p289 = por %p287, %p288
    %s290 = ssub.s32 %s25, %s37
    %s291 = ssub.s32 %s26, %s33
    %s292 = sor.u32 %s290, %s291
    %p293 = scmp.eq.s32.totalorder %s292, 0
    %s295 = sadd.s32 %s294, 1
    %s296 = scalar_select %p293, %s294, %s295
    %p299 = pneg %p293
    %p300 = scmp.eq.s32.totalorder %s18, 3
    %p301 = por %p299, %p300
    %p302 = scmp.ne.s32.totalorder %s294, %s297
    %p303 = scmp.eq.s32.totalorder %s18, 0
    %p304 = por %p302, %p303
    %p305 = scmp.ne.s32.totalorder %s294, %s297
    %p306 = scmp.eq.s32.totalorder %s23, 3
    %p307 = por %p305, %p306
    %p308 = scmp.ne.s32.totalorder %s297, %s298
    %p309 = scmp.eq.s32.totalorder %s23, 0
    %p310 = por %p308, %p309
    %p311 = scmp.ne.s32.totalorder %s297, %s298
    %p312 = scmp.eq.s32.totalorder %s24, 3
    %p313 = por %p311, %p312
    %p315 = scmp.ne.s32.totalorder %s298, %s314
    %p316 = scmp.eq.s32.totalorder %s24, 0
    %p317 = por %p315, %p316
    %p318 = scmp.le.s32.totalorder 1, %s18
    %p319 = scmp.lt.s32.totalorder %s18, 5
    %p320 = pnand %p318, %p319
    %p321 = pneg %p320
    // Predicated region
    $region9: #{tpu_custom_call.1} parent=5 // pred_check
      _
    $region10: #{tpu_custom_call.1} parent=5 // pred_check_branch
      %323 = sbr.rel (%p320) target = $region12
    $region11: #{tpu_custom_call.1} parent=5 // pred_region
      %s324 = ssub.s32 %s18, 1
      // Predicated region
      $region13: #{tpu_custom_call.1} parent=11 // pred_check
        %p325 = pneg %p107
      $region14: #{tpu_custom_call.1} parent=11 // pred_check_branch
        %327 = sbr.rel (%p325) target = $region16
      $region15: #{tpu_custom_call.1} parent=11 // pred_region
        _
      $region16: #{tpu_custom_call.1} parent=11 // pred_fallthru
        _
      // Predicated region
      $region17: #{tpu_custom_call.1} parent=11 // pred_check
        %p328 = pneg %p128
      $region18: #{tpu_custom_call.1} parent=11 // pred_check_branch
        %330 = sbr.rel (%p328) target = $region20
      $region19: #{tpu_custom_call.1} parent=11 // pred_region
        _
      $region20: #{tpu_custom_call.1} parent=11 // pred_fallthru
        _
      // Predicated region
      $region21: #{tpu_custom_call.1} parent=11 // pred_check
        %p331 = pneg %p149
      $region22: #{tpu_custom_call.1} parent=11 // pred_check_branch
        %333 = sbr.rel (%p331) target = $region24
      $region23: #{tpu_custom_call.1} parent=11 // pred_region
        _
      $region24: #{tpu_custom_call.1} parent=11 // pred_fallthru
        _
      // Predicated region
      $region25: #{tpu_custom_call.1} parent=11 // pred_check
        %p334 = pneg %p170
      $region26: #{tpu_custom_call.1} parent=11 // pred_check_branch
        %336 = sbr.rel (%p334) target = $region28
      $region27: #{tpu_custom_call.1} parent=11 // pred_region
        _
      $region28: #{tpu_custom_call.1} parent=11 // pred_fallthru
        _
      // Predicated region
      $region29: #{tpu_custom_call.1} parent=11 // pred_check
        %p337 = pneg %p191
      $region30: #{tpu_custom_call.1} parent=11 // pred_check_branch
        %339 = sbr.rel (%p337) target = $region32
      $region31: #{tpu_custom_call.1} parent=11 // pred_region
        _
      $region32: #{tpu_custom_call.1} parent=11 // pred_fallthru
        _
      // Predicated region
      $region33: #{tpu_custom_call.1} parent=11 // pred_check
        %p340 = pneg %p212
      $region34: #{tpu_custom_call.1} parent=11 // pred_check_branch
        %342 = sbr.rel (%p340) target = $region36
      $region35: #{tpu_custom_call.1} parent=11 // pred_region
        _
      $region36: #{tpu_custom_call.1} parent=11 // pred_fallthru
        _
      // Predicated region
      $region37: #{tpu_custom_call.1} parent=11 // pred_check
        %p343 = pneg %p233
      $region38: #{tpu_custom_call.1} parent=11 // pred_check_branch
        %345 = sbr.rel (%p343) target = $region40
      $region39: #{tpu_custom_call.1} parent=11 // pred_region
        _
      $region40: #{tpu_custom_call.1} parent=11 // pred_fallthru
        _
      // Predicated region
      $region41: #{tpu_custom_call.1} parent=11 // pred_check
        %p346 = pneg %p254
      $region42: #{tpu_custom_call.1} parent=11 // pred_check_branch
        %348 = sbr.rel (%p346) target = $region44
      $region43: #{tpu_custom_call.1} parent=11 // pred_region
        _
      $region44: #{tpu_custom_call.1} parent=11 // pred_fallthru
        _
    $region12: #{tpu_custom_call.1} parent=5 // pred_fallthru
      _
    %p349 = scmp.lt.s32.totalorder %s18, 4
    // Predicated region
    $region45: #{tpu_custom_call.1} parent=5 // pred_check
      %p350 = pneg %p349
    $region46: #{tpu_custom_call.1} parent=5 // pred_check_branch
      %352 = sbr.rel (%p350) target = $region48
    $region47: #{tpu_custom_call.1} parent=5 // pred_region
      // Predicated region
      $region49: #{tpu_custom_call.1} parent=47 // pred_check
        %p353 = pneg %p52
      $region50: #{tpu_custom_call.1} parent=47 // pred_check_branch
        %355 = sbr.rel (%p353) target = $region52
      $region51: #{tpu_custom_call.1} parent=47 // pred_region
        %p356 = scmp.lt.s32.totalorder %s25, 3
        %s357 = scalar_select %p356, %s25, 3
        %p358 = scmp.lt.s32.totalorder %s26, 0
        %s359 = scalar_select %p358, %s26, 0
        %s360 = smul.addr %s357, 4
        %s361 = sadd.s32 %s359, %s360
        %s362 = smul.addr %s361, 8
        %s363 = scalar_lea.vmem %s0, %s362
      $region52: #{tpu_custom_call.1} parent=47 // pred_fallthru
        _
      // Predicated region
      $region53: #{tpu_custom_call.1} parent=47 // pred_check
        %p364 = pneg %p80
      $region54: #{tpu_custom_call.1} parent=47 // pred_check_branch
        %366 = sbr.rel (%p364) target = $region56
      $region55: #{tpu_custom_call.1} parent=47 // pred_region
        %p367 = scmp.lt.s32.totalorder %s25, 3
        %s368 = scalar_select %p367, %s25, 3
        %p369 = scmp.lt.s32.totalorder %s26, 0
        %s370 = scalar_select %p369, %s26, 0
        %s371 = smul.addr %s368, 4
        %s372 = sadd.s32 %s370, %s371
        %s373 = smul.addr %s372, 8
        %s374 = scalar_lea.vmem %s1, %s373
      $region56: #{tpu_custom_call.1} parent=47 // pred_fallthru
        _
    $region48: #{tpu_custom_call.1} parent=5 // pred_fallthru
      _
    %p375 = scmp.le.s32.totalorder 1, %s18
    %p376 = scmp.lt.s32.totalorder %s18, 5
    %p377 = pnand %p375, %p376
    %p378 = pneg %p377
    // Predicated region
    $region57: #{tpu_custom_call.1} parent=5 // pred_check
      _
    $region58: #{tpu_custom_call.1} parent=5 // pred_check_branch
      %380 = sbr.rel (%p377) target = $region60
    $region59: #{tpu_custom_call.1} parent=5 // pred_region
      %s381 = ssub.s32 %s18, 1
      %p382 = scmp.lt.s32.totalorder %s27, 3
      %s383 = scalar_select %p382, %s27, 3
      %p384 = scmp.lt.s32.totalorder %s28, 0
      %s385 = scalar_select %p384, %s28, 0
      %s386 = smul.addr %s383, 4
      %s387 = sadd.s32 %s385, %s386
      %s388 = smul.addr %s387, 8
      %s389 = scalar_lea.vmem %s0, %s388
      %p390 = pneg %p58
      %p391 = pneg %p55
      %p392 = scmp.lt.s32.totalorder %s27, 3
      %s393 = scalar_select %p392, %s27, 3
      %p394 = scmp.lt.s32.totalorder %s28, 0
      %s395 = scalar_select %p394, %s28, 0
      %s396 = smul.addr %s393, 4
      %s397 = sadd.s32 %s395, %s396
      %s398 = smul.addr %s397, 8
      %s399 = scalar_lea.vmem %s1, %s398
      %p400 = pneg %p86
      %p401 = pneg %p83
      %p402 = pneg %p107
      %p403 = pneg %p104
      %p404 = pneg %p128
      %p405 = pneg %p125
      %p406 = pneg %p149
      %p407 = pneg %p146
      %p408 = pneg %p170
      %p409 = pneg %p167
      %p410 = pneg %p191
      %p411 = pneg %p188
      %p412 = pneg %p212
      %p413 = pneg %p209
      %p414 = pneg %p233
      %p415 = pneg %p230
      %p416 = pneg %p254
      %p417 = pneg %p251
      %p418 = pneg %p282
      %p419 = pneg %p279
      %p420 = scmp.lt.s32.totalorder %s27, 3
      %s421 = scalar_select %p420, %s27, 3
      %p422 = scmp.lt.s32.totalorder %s28, 0
      %s423 = scalar_select %p422, %s28, 0
      %s424 = smul.addr %s421, 4
      %s425 = sadd.s32 %s423, %s424
      %s426 = smul.addr %s425, 8
      %s427 = scalar_lea.vmem %s10, %s426
      %p428 = pneg %p310
      %p429 = pneg %p307
      %p430 = scmp.lt.s32.totalorder %s27, 3
      %s431 = scalar_select %p430, %s27, 3
      %p432 = scmp.lt.s32.totalorder %s28, 0
      %s433 = scalar_select %p432, %s28, 0
      %s434 = smul.addr %s431, 4
      %s435 = sadd.s32 %s433, %s434
      %s436 = smul.addr %s435, 8
      %s437 = scalar_lea.vmem %s11, %s436
      %p438 = scmp.lt.s32.totalorder %s27, 3
      %s439 = scalar_select %p438, %s27, 3
      %p440 = scmp.lt.s32.totalorder %s28, 0
      %s441 = scalar_select %p440, %s28, 0
      %s442 = smul.addr %s439, 4
      %s443 = sadd.s32 %s441, %s442
      %s444 = smul.addr %s443, 8
      %s445 = scalar_lea.vmem %s0, %s444
      %p446 = scmp.lt.s32.totalorder %s27, 3
      %s447 = scalar_select %p446, %s27, 3
      %p448 = scmp.lt.s32.totalorder %s28, 0
      %s449 = scalar_select %p448, %s28, 0
      %s450 = smul.addr %s447, 4
      %s451 = sadd.s32 %s449, %s450
      %s452 = smul.addr %s451, 8
      %s453 = scalar_lea.vmem %s1, %s452
      %p454 = scmp.lt.s32.totalorder %s27, 3
      %s455 = scalar_select %p454, %s27, 3
      %p456 = scmp.lt.s32.totalorder %s28, 0
      %s457 = scalar_select %p456, %s28, 0
      %s458 = smul.addr %s455, 4
      %s459 = sadd.s32 %s457, %s458
      %s460 = smul.addr %s459, 8
      %s461 = scalar_lea.vmem %s10, %s460
      %p462 = scmp.lt.s32.totalorder %s27, 3
      %s463 = scalar_select %p462, %s27, 3
      %p464 = scmp.lt.s32.totalorder %s28, 0
      %s465 = scalar_select %p464, %s28, 0
      %s466 = smul.addr %s463, 4
      %s467 = sadd.s32 %s465, %s466
      %s468 = smul.addr %s467, 8
      %s469 = scalar_lea.vmem %s11, %s468
      %v471 = vld [vmem:[%s4] sm:$0xf]
      %v472 = vld [vmem:[%s4 + $0x4] sm:$0xf]
      %v473 = vld [vmem:[%s4 + $0x8] sm:$0xf]
      %v474 = vld [vmem:[%s4 + $0xc] sm:$0xf]
      %v475 = vld [vmem:[%s445] sm:$0xff]
      %v476 = vld [vmem:[%s445 + $0x8] sm:$0xff]
      %v477 = vld [vmem:[%s445 + $0x10] sm:$0xff]
      %v478 = vld [vmem:[%s445 + $0x18] sm:$0xff]
      %v479 = vld [vmem:[%s2] sm:$0xff]
      %v480 = vld [vmem:[%s2 + $0x8] sm:$0xff]
      %v481 = vld [vmem:[%s2 + $0x10] sm:$0xff]
      %v482 = vld [vmem:[%s2 + $0x18] sm:$0xff]
      %v483 = vld [vmem:[%s3] sm:$0xff]
      %v484 = vld [vmem:[%s3 + $0x8] sm:$0xff]
      %v485 = vld [vmem:[%s3 + $0x10] sm:$0xff]
      %v486 = vld [vmem:[%s3 + $0x18] sm:$0xff]
      %vm487 = vcmask 130048
      %v488 = vsel %vm487, %v475, 0.0
      %v489 = vsel %vm487, %v476, 0.0
      %v490 = vadd.f32 %v488, %v489
      %v491 = vsel %vm487, %v477, 0.0
      %v492 = vadd.f32 %v490, %v491
      %v493 = vsel %vm487, %v478, 0.0
      %v494 = vadd.f32 %v492, %v493
      %v495 = vrot.slane %v494, 4
      %v496 = vadd.f32 %v494, %v495
      %v497 = vrot.slane %v496, 2
      %v498 = vadd.f32 %v496, %v497
      %v499 = vrot.slane %v498, 1
      %v500 = vadd.f32 %v498, %v499
      %v501 = vrcp.pop 32.0
      %v502 = vmul.f32 %v500, %v501
      %v503 = vmul.f32 %v475, %v475
      %v504 = vmul.f32 %v476, %v476
      %v505 = vmul.f32 %v477, %v477
      %v506 = vmul.f32 %v478, %v478
      %v507 = vsel %vm487, %v503, 0.0
      %v508 = vsel %vm487, %v504, 0.0
      %v509 = vadd.f32 %v507, %v508
      %v510 = vsel %vm487, %v505, 0.0
      %v511 = vadd.f32 %v509, %v510
      %v512 = vsel %vm487, %v506, 0.0
      %v513 = vadd.f32 %v511, %v512
      %v514 = vrot.slane %v513, 4
      %v515 = vadd.f32 %v513, %v514
      %v516 = vrot.slane %v515, 2
      %v517 = vadd.f32 %v515, %v516
      %v518 = vrot.slane %v517, 1
      %v519 = vadd.f32 %v517, %v518
      %v520 = vmul.f32 %v519, %v501
      %v521 = vmul.f32 %v502, %v502
      %v522 = vsub.f32 %v520, %v521
      %v523 = vsub.f32 %v475, %v502
      %v524 = vsub.f32 %v476, %v502
      %v525 = vsub.f32 %v477, %v502
      %v526 = vsub.f32 %v478, %v502
      %v527 = vadd.f32 %v522, 1e-05
      %v528 = vrsqrt.pop %v527
      %v529 = vmul.f32 %v523, %v528
      %v530 = vmul.f32 %v524, %v528
      %v531 = vmul.f32 %v525, %v528
      %v532 = vmul.f32 %v526, %v528
      %534 = vset.pattern.permute.xlu0 0
      %535 = vperm.xlu0 %534, %v479
      %v536 = vpop.permute.xlu0 %535
      %539 = vset.pattern.permute.xlu0 0
      %540 = vperm.xlu0 %539, %v480
      %v541 = vpop.permute.xlu0 %540
      %544 = vset.pattern.permute.xlu0 0
      %545 = vperm.xlu0 %544, %v481
      %v546 = vpop.permute.xlu0 %545
      %549 = vset.pattern.permute.xlu0 0
      %550 = vperm.xlu0 %549, %v482
      %v551 = vpop.permute.xlu0 %550
      %v553 = vmul.f32 %v529, %v536
      %v554 = vmul.f32 %v530, %v541
      %v555 = vmul.f32 %v531, %v546
      %v556 = vmul.f32 %v532, %v551
      %558 = vset.pattern.permute.xlu0 0
      %559 = vperm.xlu0 %558, %v483
      %v560 = vpop.permute.xlu0 %559
      %563 = vset.pattern.permute.xlu0 0
      %564 = vperm.xlu0 %563, %v484
      %v565 = vpop.permute.xlu0 %564
      %568 = vset.pattern.permute.xlu0 0
      %569 = vperm.xlu0 %568, %v485
      %v570 = vpop.permute.xlu0 %569
      %573 = vset.pattern.permute.xlu0 0
      %574 = vperm.xlu0 %573, %v486
      %v575 = vpop.permute.xlu0 %574
      %v577 = vadd.f32 %v553, %v560
      %v578 = vadd.f32 %v554, %v565
      %v579 = vadd.f32 %v555, %v570
      %v580 = vadd.f32 %v556, %v575
      %v581 = vpack.c.bf16 %v578, %v577
      %v582 = vpack.c.bf16 %v580, %v579
      %v583 = vld [vmem:[%s5] sm:$0xff]
      %v584 = vld [vmem:[%s5 + $0x8] sm:$0xff]
      %v585 = vld [vmem:[%s5 + $0x10] sm:$0xff]
      %v586 = vld [vmem:[%s5 + $0x18] sm:$0xff]
      %588 = vset.pattern.permute.xlu0 0
      %589 = vperm.xlu0 %588, %v583
      %v590 = vpop.permute.xlu0 %589
      %593 = vset.pattern.permute.xlu0 0
      %594 = vperm.xlu0 %593, %v584
      %v595 = vpop.permute.xlu0 %594
      %598 = vset.pattern.permute.xlu0 0
      %599 = vperm.xlu0 %598, %v585
      %v600 = vpop.permute.xlu0 %599
      %603 = vset.pattern.permute.xlu0 0
      %604 = vperm.xlu0 %603, %v586
      %v605 = vpop.permute.xlu0 %604
      %v611 = vunpack.c.l.b16 %v471
      %v612 = vunpack.c.l.b16 %v472
      %v613 = vunpack.c.l.b16 %v473
      %v614 = vunpack.c.l.b16 %v474
      %v615 = vpack.c.b16 %v612, %v611
      %v616 = vpack.c.b16 %v614, %v613
      %619 = vxpose.xlu0.c.b16.start [1/8] %v615, 128
      %620 = vxpose.xlu0.c.b16.cont [2/8] %v616, 128
      %621 = vxpose.xlu0.c.b16.cont [3/8] 0, 128
      %622 = vxpose.xlu0.c.b16.cont [4/8] 0, 128
      %623 = vxpose.xlu0.c.b16.cont [5/8] 0, 128
      %624 = vxpose.xlu0.c.b16.cont [6/8] 0, 128
      %625 = vxpose.xlu0.c.b16.cont [7/8] 0, 128
      %626 = vxpose.xlu0.c.b16.end [8/8] 0, 128
      %v627 = vpop.trf.xlu0
      %v628 = vpop.trf.xlu0
      %v629 = vpop.trf.xlu0
      %v630 = vpop.trf.xlu0
      %v631 = vpop.trf.xlu0
      %v632 = vpop.trf.xlu0
      %v633 = vpop.trf.xlu0
      %v634 = vpop.trf.xlu0
      %vm635 = vcmask 261120
      %v637 = vsel %vm635, %v627, 0
      %v640 = vsel %vm635, %v628, 0
      %642 = vmatprep.subr.bf16.mxu0 0
      %643 = vmatpush1.bf16.msra.mxu0 0
      %644 = vmatprep.subr.bf16.mxu0 0
      %645 = vmatpush1.bf16.msra.mxu0 0
      %646 = vmatprep.subr.bf16.mxu0 0
      %647 = vmatpush1.bf16.msra.mxu0 0
      %648 = vmatprep.subr.bf16.mxu0 0
      %649 = vmatpush1.bf16.msra.mxu0 0
      %650 = vmatprep.subr.bf16.mxu0 0
      %651 = vmatpush1.bf16.msra.mxu0 0
      %652 = vmatprep.subr.bf16.mxu0 0
      %653 = vmatpush1.bf16.msra.mxu0 0
      %654 = vmatprep.subr.bf16.mxu0 0
      %655 = vmatpush1.bf16.msra.mxu0 %v582
      %656 = vmatprep.subr.bf16.mxu0 0
      %657 = vmatpush1.bf16.msra.mxu0 %v581
      %658 = vmatprep.subr.bf16.mxu0 0
      %659 = vmatpush2.bf16.msra.mxu0 0
      %660 = vmatprep.subr.bf16.mxu0 0
      %661 = vmatpush2.bf16.msra.mxu0 0
      %662 = vmatprep.subr.bf16.mxu0 0
      %663 = vmatpush2.bf16.msra.mxu0 0
      %664 = vmatprep.subr.bf16.mxu0 0
      %665 = vmatpush2.bf16.msra.mxu0 0
      %666 = vmatprep.subr.bf16.mxu0 0
      %667 = vmatpush2.bf16.msra.mxu0 0
      %668 = vmatprep.subr.bf16.mxu0 0
      %669 = vmatpush2.bf16.msra.mxu0 0
      %670 = vmatprep.subr.bf16.mxu0 0
      %671 = vmatpush2.bf16.msra.mxu0 0
      %672 = vmatprep.subr.bf16.mxu0 0
      %673 = vmatpush2.bf16.msra.mxu0 0
      %674 = vmatprep.mubr.bf16.mxu0 0
      %675 = vmatmul.mubr.bf16.gmra.mxu0 %v637
      %v676 = vpop.f32.mrf.mxu0
      %v677 = vadd.f32 %v590, %v676
      %v678 = vpop.f32.mrf.mxu0
      %v679 = vpop.f32.mrf.mxu0
      %v680 = vadd.f32 %v595, %v679
      %v681 = vpop.f32.mrf.mxu0
      %682 = vmatprep.mubr.bf16.mxu0 0
      %683 = vmatmul.mubr.bf16.gmra.mxu0 %v640
      %v684 = vpop.f32.mrf.mxu0
      %v685 = vadd.f32 %v600, %v684
      %v686 = vpop.f32.mrf.mxu0
      %v687 = vpop.f32.mrf.mxu0
      %v688 = vadd.f32 %v605, %v687
      %v689 = vpop.f32.mrf.mxu0
      %690 = vdwg.mxu0
      %691 = vst.msk [vmem:[%s461] sm:$0xff] %vm487, %v677
      %692 = vst.msk [vmem:[%s461 + $0x8] sm:$0xff] %vm487, %v680
      %693 = vst.msk [vmem:[%s461 + $0x10] sm:$0xff] %vm487, %v685
      %694 = vst.msk [vmem:[%s461 + $0x18] sm:$0xff] %vm487, %v688
      %v695 = vld [vmem:[%s8] sm:$0xf]
      %v696 = vld [vmem:[%s8 + $0x4] sm:$0xf]
      %v697 = vld [vmem:[%s8 + $0x8] sm:$0xf]
      %v698 = vld [vmem:[%s8 + $0xc] sm:$0xf]
      %v699 = vld [vmem:[%s453] sm:$0xff]
      %v700 = vld [vmem:[%s453 + $0x8] sm:$0xff]
      %v701 = vld [vmem:[%s453 + $0x10] sm:$0xff]
      %v702 = vld [vmem:[%s453 + $0x18] sm:$0xff]
      %v703 = vld [vmem:[%s6] sm:$0xff]
      %v704 = vld [vmem:[%s6 + $0x8] sm:$0xff]
      %v705 = vld [vmem:[%s6 + $0x10] sm:$0xff]
      %v706 = vld [vmem:[%s6 + $0x18] sm:$0xff]
      %v707 = vld [vmem:[%s7] sm:$0xff]
      %v708 = vld [vmem:[%s7 + $0x8] sm:$0xff]
      %v709 = vld [vmem:[%s7 + $0x10] sm:$0xff]
      %v710 = vld [vmem:[%s7 + $0x18] sm:$0xff]
      %v711 = vsel %vm487, %v699, 0.0
      %v712 = vsel %vm487, %v700, 0.0
      %v713 = vadd.f32 %v711, %v712
      %v714 = vsel %vm487, %v701, 0.0
      %v715 = vadd.f32 %v713, %v714
      %v716 = vsel %vm487, %v702, 0.0
      %v717 = vadd.f32 %v715, %v716
      %v718 = vrot.slane %v717, 4
      %v719 = vadd.f32 %v717, %v718
      %v720 = vrot.slane %v719, 2
      %v721 = vadd.f32 %v719, %v720
      %v722 = vrot.slane %v721, 1
      %v723 = vadd.f32 %v721, %v722
      %v724 = vmul.f32 %v723, %v501
      %v725 = vmul.f32 %v699, %v699
      %v726 = vmul.f32 %v700, %v700
      %v727 = vmul.f32 %v701, %v701
      %v728 = vmul.f32 %v702, %v702
      %v729 = vsel %vm487, %v725, 0.0
      %v730 = vsel %vm487, %v726, 0.0
      %v731 = vadd.f32 %v729, %v730
      %v732 = vsel %vm487, %v727, 0.0
      %v733 = vadd.f32 %v731, %v732
      %v734 = vsel %vm487, %v728, 0.0
      %v735 = vadd.f32 %v733, %v734
      %v736 = vrot.slane %v735, 4
      %v737 = vadd.f32 %v735, %v736
      %v738 = vrot.slane %v737, 2
      %v739 = vadd.f32 %v737, %v738
      %v740 = vrot.slane %v739, 1
      %v741 = vadd.f32 %v739, %v740
      %v742 = vmul.f32 %v741, %v501
      %v743 = vmul.f32 %v724, %v724
      %v744 = vsub.f32 %v742, %v743
      %v745 = vsub.f32 %v699, %v724
      %v746 = vsub.f32 %v700, %v724
      %v747 = vsub.f32 %v701, %v724
      %v748 = vsub.f32 %v702, %v724
      %v749 = vadd.f32 %v744, 1e-05
      %v750 = vrsqrt.pop %v749
      %v751 = vmul.f32 %v745, %v750
      %v752 = vmul.f32 %v746, %v750
      %v753 = vmul.f32 %v747, %v750
      %v754 = vmul.f32 %v748, %v750
      %756 = vset.pattern.permute.xlu0 0
      %757 = vperm.xlu0 %756, %v703
      %v758 = vpop.permute.xlu0 %757
      %761 = vset.pattern.permute.xlu0 0
      %762 = vperm.xlu0 %761, %v704
      %v763 = vpop.permute.xlu0 %762
      %766 = vset.pattern.permute.xlu0 0
      %767 = vperm.xlu0 %766, %v705
      %v768 = vpop.permute.xlu0 %767
      %771 = vset.pattern.permute.xlu0 0
      %772 = vperm.xlu0 %771, %v706
      %v773 = vpop.permute.xlu0 %772
      %v775 = vmul.f32 %v751, %v758
      %v776 = vmul.f32 %v752, %v763
      %v777 = vmul.f32 %v753, %v768
      %v778 = vmul.f32 %v754, %v773
      %780 = vset.pattern.permute.xlu0 0
      %781 = vperm.xlu0 %780, %v707
      %v782 = vpop.permute.xlu0 %781
      %785 = vset.pattern.permute.xlu0 0
      %786 = vperm.xlu0 %785, %v708
      %v787 = vpop.permute.xlu0 %786
      %790 = vset.pattern.permute.xlu0 0
      %791 = vperm.xlu0 %790, %v709
      %v792 = vpop.permute.xlu0 %791
      %795 = vset.pattern.permute.xlu0 0
      %796 = vperm.xlu0 %795, %v710
      %v797 = vpop.permute.xlu0 %796
      %v799 = vadd.f32 %v775, %v782
      %v800 = vadd.f32 %v776, %v787
      %v801 = vadd.f32 %v777, %v792
      %v802 = vadd.f32 %v778, %v797
      %v803 = vpack.c.bf16 %v800, %v799
      %v804 = vpack.c.bf16 %v802, %v801
      %v805 = vld [vmem:[%s9] sm:$0xff]
      %v806 = vld [vmem:[%s9 + $0x8] sm:$0xff]
      %v807 = vld [vmem:[%s9 + $0x10] sm:$0xff]
      %v808 = vld [vmem:[%s9 + $0x18] sm:$0xff]
      %810 = vset.pattern.permute.xlu0 0
      %811 = vperm.xlu0 %810, %v805
      %v812 = vpop.permute.xlu0 %811
      %815 = vset.pattern.permute.xlu0 0
      %816 = vperm.xlu0 %815, %v806
      %v817 = vpop.permute.xlu0 %816
      %820 = vset.pattern.permute.xlu0 0
      %821 = vperm.xlu0 %820, %v807
      %v822 = vpop.permute.xlu0 %821
      %825 = vset.pattern.permute.xlu0 0
      %826 = vperm.xlu0 %825, %v808
      %v827 = vpop.permute.xlu0 %826
      %v833 = vunpack.c.l.b16 %v695
      %v834 = vunpack.c.l.b16 %v696
      %v835 = vunpack.c.l.b16 %v697
      %v836 = vunpack.c.l.b16 %v698
      %v837 = vpack.c.b16 %v834, %v833
      %v838 = vpack.c.b16 %v836, %v835
      %841 = vxpose.xlu0.c.b16.start [1/8] %v837, 128
      %842 = vxpose.xlu0.c.b16.cont [2/8] %v838, 128
      %843 = vxpose.xlu0.c.b16.cont [3/8] 0, 128
      %844 = vxpose.xlu0.c.b16.cont [4/8] 0, 128
      %845 = vxpose.xlu0.c.b16.cont [5/8] 0, 128
      %846 = vxpose.xlu0.c.b16.cont [6/8] 0, 128
      %847 = vxpose.xlu0.c.b16.cont [7/8] 0, 128
      %848 = vxpose.xlu0.c.b16.end [8/8] 0, 128
      %v849 = vpop.trf.xlu0
      %v850 = vpop.trf.xlu0
      %v851 = vpop.trf.xlu0
      %v852 = vpop.trf.xlu0
      %v853 = vpop.trf.xlu0
      %v854 = vpop.trf.xlu0
      %v855 = vpop.trf.xlu0
      %v856 = vpop.trf.xlu0
      %v858 = vsel %vm635, %v849, 0
      %v861 = vsel %vm635, %v850, 0
      %863 = vmatprep.subr.bf16.mxu0 0
      %864 = vmatpush1.bf16.msra.mxu0 0
      %865 = vmatprep.subr.bf16.mxu0 0
      %866 = vmatpush1.bf16.msra.mxu0 0
      %867 = vmatprep.subr.bf16.mxu0 0
      %868 = vmatpush1.bf16.msra.mxu0 0
      %869 = vmatprep.subr.bf16.mxu0 0
      %870 = vmatpush1.bf16.msra.mxu0 0
      %871 = vmatprep.subr.bf16.mxu0 0
      %872 = vmatpush1.bf16.msra.mxu0 0
      %873 = vmatprep.subr.bf16.mxu0 0
      %874 = vmatpush1.bf16.msra.mxu0 0
      %875 = vmatprep.subr.bf16.mxu0 0
      %876 = vmatpush1.bf16.msra.mxu0 %v804
      %877 = vmatprep.subr.bf16.mxu0 0
      %878 = vmatpush1.bf16.msra.mxu0 %v803
      %879 = vmatprep.subr.bf16.mxu0 0
      %880 = vmatpush2.bf16.msra.mxu0 0
      %881 = vmatprep.subr.bf16.mxu0 0
      %882 = vmatpush2.bf16.msra.mxu0 0
      %883 = vmatprep.subr.bf16.mxu0 0
      %884 = vmatpush2.bf16.msra.mxu0 0
      %885 = vmatprep.subr.bf16.mxu0 0
      %886 = vmatpush2.bf16.msra.mxu0 0
      %887 = vmatprep.subr.bf16.mxu0 0
      %888 = vmatpush2.bf16.msra.mxu0 0
      %889 = vmatprep.subr.bf16.mxu0 0
      %890 = vmatpush2.bf16.msra.mxu0 0
      %891 = vmatprep.subr.bf16.mxu0 0
      %892 = vmatpush2.bf16.msra.mxu0 0
      %893 = vmatprep.subr.bf16.mxu0 0
      %894 = vmatpush2.bf16.msra.mxu0 0
      %895 = vmatprep.mubr.bf16.mxu0 0
      %896 = vmatmul.mubr.bf16.gmra.mxu0 %v858
      %v897 = vpop.f32.mrf.mxu0
      %v898 = vadd.f32 %v812, %v897
      %v899 = vpop.f32.mrf.mxu0
      %v900 = vpop.f32.mrf.mxu0
      %v901 = vadd.f32 %v817, %v900
      %v902 = vpop.f32.mrf.mxu0
      %903 = vmatprep.mubr.bf16.mxu0 0
      %904 = vmatmul.mubr.bf16.gmra.mxu0 %v861
      %v905 = vpop.f32.mrf.mxu0
      %v906 = vadd.f32 %v822, %v905
      %v907 = vpop.f32.mrf.mxu0
      %v908 = vpop.f32.mrf.mxu0
      %v909 = vadd.f32 %v827, %v908
      %v910 = vpop.f32.mrf.mxu0
      %911 = vdwg.mxu0
      %912 = vst.msk [vmem:[%s469] sm:$0xff] %vm487, %v898
      %913 = vst.msk [vmem:[%s469 + $0x8] sm:$0xff] %vm487, %v901
      %914 = vst.msk [vmem:[%s469 + $0x10] sm:$0xff] %vm487, %v906
      %915 = vst.msk [vmem:[%s469 + $0x18] sm:$0xff] %vm487, %v909
      %p916 = scmp.lt.s32.totalorder %s27, 3
      %s917 = scalar_select %p916, %s27, 3
      %p918 = scmp.lt.s32.totalorder %s28, 0
      %s919 = scalar_select %p918, %s28, 0
      %s920 = smul.addr %s917, 4
      %s921 = sadd.s32 %s919, %s920
      %s922 = smul.addr %s921, 8
      %s923 = scalar_lea.vmem %s10, %s922
      %p924 = scmp.lt.s32.totalorder %s27, 3
      %s925 = scalar_select %p924, %s27, 3
      %p926 = scmp.lt.s32.totalorder %s28, 0
      %s927 = scalar_select %p926, %s28, 0
      %s928 = smul.addr %s925, 4
      %s929 = sadd.s32 %s927, %s928
      %s930 = smul.addr %s929, 8
      %s931 = scalar_lea.vmem %s11, %s930
      // Predicated region
      $region61: #{tpu_custom_call.1} parent=59 // pred_check
        %p932 = pneg %p279
      $region62: #{tpu_custom_call.1} parent=59 // pred_check_branch
        %934 = sbr.rel (%p932) target = $region64
      $region63: #{tpu_custom_call.1} parent=59 // pred_region
        _
      $region64: #{tpu_custom_call.1} parent=59 // pred_fallthru
        _
      // Predicated region
      $region65: #{tpu_custom_call.1} parent=59 // pred_check
        %p935 = pneg %p307
      $region66: #{tpu_custom_call.1} parent=59 // pred_check_branch
        %937 = sbr.rel (%p935) target = $region68
      $region67: #{tpu_custom_call.1} parent=59 // pred_region
        _
      $region68: #{tpu_custom_call.1} parent=59 // pred_fallthru
        _
    $region60: #{tpu_custom_call.1} parent=5 // pred_fallthru
      _
    %p938 = scmp.le.s32.totalorder 2, %s18
    // Predicated region
    $region69: #{tpu_custom_call.1} parent=5 // pred_check
      %p939 = pneg %p938
    $region70: #{tpu_custom_call.1} parent=5 // pred_check_branch
      %941 = sbr.rel (%p939) target = $region72
    $region71: #{tpu_custom_call.1} parent=5 // pred_region
      %s942 = ssub.s32 %s18, 2
      // Predicated region
      $region73: #{tpu_custom_call.1} parent=71 // pred_check
        %p943 = pneg %p285
      $region74: #{tpu_custom_call.1} parent=71 // pred_check_branch
        %945 = sbr.rel (%p943) target = $region76
      $region75: #{tpu_custom_call.1} parent=71 // pred_region
        %p946 = scmp.lt.s32.totalorder %s29, 3
        %s947 = scalar_select %p946, %s29, 3
        %p948 = scmp.lt.s32.totalorder %s30, 0
        %s949 = scalar_select %p948, %s30, 0
        %s950 = smul.addr %s947, 4
        %s951 = sadd.s32 %s949, %s950
        %s952 = smul.addr %s951, 8
        %s953 = scalar_lea.vmem %s10, %s952
      $region76: #{tpu_custom_call.1} parent=71 // pred_fallthru
        _
      // Predicated region
      $region77: #{tpu_custom_call.1} parent=71 // pred_check
        %p954 = pneg %p313
      $region78: #{tpu_custom_call.1} parent=71 // pred_check_branch
        %956 = sbr.rel (%p954) target = $region80
      $region79: #{tpu_custom_call.1} parent=71 // pred_region
        %p957 = scmp.lt.s32.totalorder %s29, 3
        %s958 = scalar_select %p957, %s29, 3
        %p959 = scmp.lt.s32.totalorder %s30, 0
        %s960 = scalar_select %p959, %s30, 0
        %s961 = smul.addr %s958, 4
        %s962 = sadd.s32 %s960, %s961
        %s963 = smul.addr %s962, 8
        %s964 = scalar_lea.vmem %s11, %s963
      $region80: #{tpu_custom_call.1} parent=71 // pred_fallthru
        _
    $region72: #{tpu_custom_call.1} parent=5 // pred_fallthru
      _
  $region6: #{tpu_custom_call.1} parent=0 // loop_footer
    %s22 = sadd.s32 1, %s18
  $region7: #{tpu_custom_call.1} parent=0 // loop_footer_branch
    %17 = sbr.rel target = $region3
  $region8: #{tpu_custom_call.1} parent=0 // loop_exit
    _

</llo_original>
